<compile_context>
chip_gen: v5e
topology: v5e:2x2
jax: 0.10.0
libtpu: 0.0.40
codegen_flags: <defaults>
</compile_context>

<pallas_src>
import functools
import math

import jax
import jax.numpy as jnp
from jax import lax
from jax.experimental import pallas as pl
from jax.experimental.pallas import tpu as pltpu


_VMEM_BLOCK_BUDGET = 12 * 1024 * 1024   # per-grid-step buffer budget (bytes)
_VMEM_LIMIT_BYTES = 32 * 1024 * 1024    # scoped VMEM limit (safe on v5e/v6e/v7x)


def _cdiv(a, b):
    return -(-a // b)


def _is_pow2(v):
    return v > 0 and (v & (v - 1)) == 0


def _mod(a, m):
    return (a & (m - 1)) if _is_pow2(m) else (a % m)


def _floordiv(a, m):
    return (a >> (m.bit_length() - 1)) if _is_pow2(m) else (a // m)


def _make_reducer_kernel(n, eff_dim, min_val, max_val, exists, use_global_rows):
    """eff_dim == dim when exclude_self else 1 (no masking needed)."""
    group = n ** (eff_dim - 1)

    def kernel(x_ref, *out_refs):
        x = x_ref[...]                              # (TR, n, C), native dtype

        if eff_dim >= 2:
            tr = x_ref.shape[0]
            # Channel-invariant boolean mask, shape (TR, n, 1); broadcast over
            # the lane (channel) axis happens inside jnp.where for free.
            shp = (tr, n, 1)
            j_idx = lax.broadcasted_iota(jnp.int32, shp, 1)   # last object axis
            row = lax.broadcasted_iota(jnp.int32, shp, 0)     # local row in tile
            if use_global_rows:
                # Tile start not group-aligned: fall back to global row ids.
                row = row + pl.program_id(0) * tr
            # Recover the remaining object indices from the (local) row id.
            rem = _mod(row, group) if eff_dim > 2 else row
            obj = [j_idx]
            for t in range(eff_dim - 1):
                obj.append(_mod(rem, n))
                if t + 1 < eff_dim - 1:
                    rem = _floordiv(rem, n)
            # Pairwise-distinct mask (a < b half only).
            mask = None
            for a in range(len(obj)):
                for b in range(a + 1, len(obj)):
                    neq = obj[a] != obj[b]
                    mask = neq if mask is None else jnp.logical_and(mask, neq)

            ex = jnp.max(jnp.where(mask, x, jnp.array(min_val, x.dtype)), axis=1)
            out_refs[0][...] = ex.astype(out_refs[0].dtype)
            if exists:
                fa = jnp.min(jnp.where(mask, x, jnp.array(max_val, x.dtype)),
                             axis=1)
                out_refs[1][...] = fa.astype(out_refs[1].dtype)
        else:
            # exclude_self=False (or dim==1): plain reduce, no mask work.
            out_refs[0][...] = jnp.max(x, axis=1).astype(out_refs[0].dtype)
            if exists:
                out_refs[1][...] = jnp.min(x, axis=1).astype(out_refs[1].dtype)

    return kernel


def reducer_forward(x, *, dim=2, exclude_self=True, exists=True,
                    min_val=0.0, max_val=0.0, mask=None):
    """Pallas implementation of Reducer.forward (mask=None path)."""
    # TODO(synk): optional external `mask` argument of Reducer.forward is not
    # wired through the kernel; only the mask=None path is implemented.
    assert mask is None
    assert x.ndim == dim + 2, "expected (batch, n*dim object axes, channels)"
    n = x.shape[-2]
    C = x.shape[-1]
    for k in range(1, dim + 1):
        assert x.shape[k] == n

    lead = x.shape[:-2]                 # (B, n, ..., n) -- dim-1 object axes
    R = int(math.prod(lead))
    x2 = x.reshape(R, n, C)

    eff_dim = dim if exclude_self else 1
    group = n ** (eff_dim - 1)
    elt = jnp.dtype(x.dtype).itemsize
    n_out = 2 if exists else 1

    # --- row-tile (TR) selection ---------------------------------------------
    # Per-row footprint: double-buffered input block + double-buffered outputs
    # + ~2 in-kernel (n, C) temporaries.  Budget is conservative enough for
    # v7x's 64 MiB VMEM (32 MiB scoped) as well as v5e/v6e.
    bytes_per_row = C * elt * (4 * n + 8)
    rows_budget = max(1, _VMEM_BLOCK_BUDGET // bytes_per_row)

    # Tile granularity: multiple of 8 (sublane alignment of the (TR, C) output
    # blocks) and, when affordable, of `group` so the in-kernel row-index
    # recovery is a grid-invariant local iota (no program_id arithmetic).
    unit = (8 * group) // math.gcd(8, group)
    if unit <= rows_budget:
        step = unit
        use_global_rows = False
    else:
        step = 8
        use_global_rows = True

    tr = max(step, (rows_budget // step) * step)
    # Keep >= 2 grid steps when possible (v7x has 2 TensorCores sharing the
    # "parallel" axis; >=2 steps also enables the input/output DMA pipeline).
    tr = min(tr, max(step, _cdiv(_cdiv(R, 2), step) * step))
    if tr >= R:
        tr = R                          # single full block (TR == R is allowed)
        use_global_rows = False         # R is always a multiple of `group`
    grid = (_cdiv(R, tr),)

    kernel = _make_reducer_kernel(n, eff_dim, float(min_val), float(max_val),
                                  exists, use_global_rows)

    out_shapes = tuple(jax.ShapeDtypeStruct((R, C), x.dtype)
                       for _ in range(n_out))
    # TODO(synk): for small C (2C < 128) the interleaved output stays lane-
    # sparse; folding channel groups into lanes is left to a future revision.
    out_specs = tuple(pl.BlockSpec((tr, C), lambda i: (i, 0))
                      for _ in range(n_out))

    flops = (6 if eff_dim >= 2 else 2) * R * n * C
    bytes_accessed = R * n * C * elt + n_out * R * C * elt
    cost = pl.CostEstimate(flops=flops, transcendentals=0,
                           bytes_accessed=bytes_accessed)

    outs = pl.pallas_call(
        kernel,
        out_shape=out_shapes,
        grid=grid,
        in_specs=[pl.BlockSpec((tr, n, C), lambda i: (i, 0, 0))],
        out_specs=out_specs,
        compiler_params=pltpu.CompilerParams(
            dimension_semantics=("parallel",),
            vmem_limit_bytes=_VMEM_LIMIT_BYTES),
        cost_estimate=cost,
    )(x2)

    if exists:
        ex, fa = outs
        # Channel interleave: out[..., 2c] = exists, out[..., 2c+1] = forall.
        # Kept in the wrapper: the in-kernel (TR, C, 2)->(TR, 2C) lane
        # relayout is not reliably supported for narrow C.
        return jnp.stack([ex, fa], axis=-1).reshape(*lead, 2 * C)
    (ex,) = outs
    return ex.reshape(*lead, C)


def reducer_reference(x, *, dim=2, exclude_self=True, exists=True,
                      min_val=0.0, max_val=0.0):
    """Pure-JAX reference mirroring the PyTorch forward (mask=None)."""
    n = x.shape[-2]
    if exclude_self:
        idxs = jnp.indices((n,) * dim)
        m = jnp.ones((n,) * dim, dtype=bool)
        for a in range(dim):
            for b in range(dim):
                if a != b:
                    m = m & (idxs[a] != idxs[b])
        m = m.astype(x.dtype).reshape((1,) + (n,) * dim + (1,))
        m = jnp.broadcast_to(m, x.shape)
        inp0 = x * m + min_val * (1 - m)
        inp1 = x * m + max_val * (1 - m)
    else:
        inp0, inp1 = x, x
    ex = jnp.max(inp0, axis=-2)
    if not exists:
        return ex
    fa = jnp.min(inp1, axis=-2)
    return jnp.stack([ex, fa], axis=-1).reshape(x.shape[:-2] + (x.shape[-1] * 2,))


if __name__ == "__main__":
    key = jax.random.PRNGKey(0)
    k1, k2 = jax.random.split(key)

    # dim=2 (binary predicates), default flags exclude_self=True / exists=True.
    B, n, C = 2, 8, 16
    x2d = jax.random.uniform(k1, (B, n, n, C), dtype=jnp.float32)
    fwd2 = jax.jit(functools.partial(reducer_forward, dim=2,
                                     exclude_self=True, exists=True,
                                     min_val=0.0, max_val=0.0))
    out2 = fwd2(x2d)
    jax.block_until_ready(out2)
    ref2 = reducer_reference(x2d, dim=2)
    assert out2.shape == (B, n, 2 * C), out2.shape
    assert jnp.allclose(out2, ref2, atol=1e-6, rtol=1e-6)

    # dim=3 (ternary predicates) exercises multi-axis object-index recovery.
    n3, C3 = 4, 8
    x3d = jax.random.uniform(k2, (B, n3, n3, n3, C3), dtype=jnp.float32)
    fwd3 = jax.jit(functools.partial(reducer_forward, dim=3))
    out3 = fwd3(x3d)
    jax.block_until_ready(out3)
    ref3 = reducer_reference(x3d, dim=3)
    assert out3.shape == (B, n3, n3, 2 * C3), out3.shape
    assert jnp.allclose(out3, ref3, atol=1e-6, rtol=1e-6)

    # exclude_self=False short-circuit path (no mask work in kernel).
    fwd_ns = jax.jit(functools.partial(reducer_forward, dim=2,
                                       exclude_self=False))
    out_ns = fwd_ns(x2d)
    jax.block_until_ready(out_ns)
    ref_ns = reducer_reference(x2d, dim=2, exclude_self=False)
    assert jnp.allclose(out_ns, ref_ns, atol=1e-6, rtol=1e-6)

    print("KERNEL_OK")
</pallas_src>

<mosaic_0001>
module attributes {stable_mosaic.version = 11 : i64} {
  func.func @kernel(%arg0: i32, %arg1: memref<8x8x16xf32, #tpu.memory_space<vmem>>, %arg2: memref<8x16xf32, #tpu.memory_space<vmem>>, %arg3: memref<8x16xf32, #tpu.memory_space<vmem>>) attributes {dimension_semantics = [#tpu.dimension_semantics<parallel>], iteration_bounds = array<i64: 2>, scalar_prefetch = 0 : i64, scratch_operands = 0 : i64, tpu.core_type = #tpu.core_type<tc>, window_params = [{transform_indices = @transform_0, window_bounds = array<i64: 8, 8, 16>}, {transform_indices = @transform_1, window_bounds = array<i64: 8, 16>}, {transform_indices = @transform_2, window_bounds = array<i64: 8, 16>}]} {
    %c0 = arith.constant 0 : index
    %c0_0 = arith.constant 0 : index
    %c0_1 = arith.constant 0 : index
    %0 = vector.load %arg1[%c0, %c0_0, %c0_1] : memref<8x8x16xf32, #tpu.memory_space<vmem>>, vector<8x8x16xf32>
    %1 = tpu.iota {dimensions = array<i32: 1>} : vector<8x8x1xi32>
    %2 = tpu.iota {dimensions = array<i32: 0>} : vector<8x8x1xi32>
    %c7_i32 = arith.constant 7 : i32
    %3 = vector.broadcast %c7_i32 : i32 to vector<8x8x1xi32>
    %4 = arith.andi %2, %3 : vector<8x8x1xi32>
    %5 = arith.cmpi ne, %1, %4 : vector<8x8x1xi32>
    %cst = arith.constant 0.000000e+00 : f32
    %6 = vector.shape_cast %5 : vector<8x8x1xi1> to vector<8x8x1xi1>
    %7 = vector.broadcast %6 : vector<8x8x1xi1> to vector<8x8x16xi1>
    %8 = vector.broadcast %cst : f32 to vector<8x8x16xf32>
    %9 = arith.select %7, %0, %8 : vector<8x8x16xi1>, vector<8x8x16xf32>
    %cst_2 = arith.constant dense<0xFF800000> : vector<8x16xf32>
    %10 = vector.multi_reduction <maximumf>, %9, %cst_2 [1] : vector<8x8x16xf32> to vector<8x16xf32>
    %c0_3 = arith.constant 0 : index
    %c0_4 = arith.constant 0 : index
    %11 = vector.load %arg2[%c0_3, %c0_4] : memref<8x16xf32, #tpu.memory_space<vmem>>, vector<8x16xf32>
    tpu.vector_store %arg2[%c0_3, %c0_4], %10 {strides = array<i32>} : memref<8x16xf32, #tpu.memory_space<vmem>>, vector<8x16xf32>,
    %cst_5 = arith.constant 0.000000e+00 : f32
    %12 = vector.shape_cast %5 : vector<8x8x1xi1> to vector<8x8x1xi1>
    %13 = vector.broadcast %12 : vector<8x8x1xi1> to vector<8x8x16xi1>
    %14 = vector.broadcast %cst_5 : f32 to vector<8x8x16xf32>
    %15 = arith.select %13, %0, %14 : vector<8x8x16xi1>, vector<8x8x16xf32>
    %cst_6 = arith.constant dense<0x7F800000> : vector<8x16xf32>
    %16 = vector.multi_reduction <minimumf>, %15, %cst_6 [1] : vector<8x8x16xf32> to vector<8x16xf32>
    %c0_7 = arith.constant 0 : index
    %c0_8 = arith.constant 0 : index
    %17 = vector.load %arg3[%c0_7, %c0_8] : memref<8x16xf32, #tpu.memory_space<vmem>>, vector<8x16xf32>
    tpu.vector_store %arg3[%c0_7, %c0_8], %16 {strides = array<i32>} : memref<8x16xf32, #tpu.memory_space<vmem>>, vector<8x16xf32>,
    return
  }
  func.func @transform_0(%arg0: i32) -> (i32, i32, i32) {
    %c0_i32 = arith.constant 0 : i32
    %c0_i32_0 = arith.constant 0 : i32
    %c0_i32_1 = arith.constant 0 : i32
    return %arg0, %c0_i32, %c0_i32_0 : i32, i32, i32
  }
  func.func @transform_1(%arg0: i32) -> (i32, i32) {
    %c0_i32 = arith.constant 0 : i32
    %c0_i32_0 = arith.constant 0 : i32
    return %arg0, %c0_i32 : i32, i32
  }
  func.func @transform_2(%arg0: i32) -> (i32, i32) {
    %c0_i32 = arith.constant 0 : i32
    %c0_i32_0 = arith.constant 0 : i32
    return %arg0, %c0_i32 : i32, i32
  }
}

</mosaic_0001>

<llo_original>
// kernel: reducer_forward.1
$region0: #{reducer_forward.1}
  #allocation0 [shape = 'u32[]', space=smem, size = 0x4, offset = 0x4, fixed_abs, tag = 'smem constant byte address 0x4 - core index']
  #allocation1 [shape = 'u32[72,128]{1,0:T(1,128)}', space=vmem, size = 0x9000, scoped, tag = 'internal scratch']
  %s0 = inlined_call_operand.hbm [shape: f32[16,8,16], index: 0, kind: input, shape index: {}]
  %s1 = inlined_call_operand.vmem [shape: f32[16,16], index: 1, kind: output, shape index: {0}]
  %s2 = inlined_call_operand.vmem [shape: f32[16,16], index: 2, kind: output, shape index: {1}]
  %3 = xla_tuple %s1, %s2
  %s4 = sld [smem:[#allocation0]]
  $region49: #{reducer_forward.1} parent=0
    _
  %s6 = ssub.s32 1, %s4
  %s7 = scalar_select 0, %s6, %s4
  $region1: #{reducer_forward.1} parent=0
    #allocation2 [shape = 'u8[65536]{0}', space=vmem, size = 0x10000, scoped, tag = 'input window, operand 0']
    #allocation3 [shape = 's32[2]{0}', space=sflag, size = 0x8, scoped, tag = 'scoped memory for reducer_forward.1']
    %8 = vsyncpa [#allocation3], 0
    %s9 = scalar_lea.sflag [#allocation3], 1
    %10 = vsyncpa %s9, 0
    loop: start=0, step=1, limit=4
    $region2: #{reducer_forward.1} parent=1 // loop_pre_header
      _
    $region3: #{reducer_forward.1} parent=1 // loop_header
      %s12 = sphi 0, %s16
      %p13 = scmp.ge.s32.totalorder %s12, 4
      %s22 = sphi 0, %s24
      %s25 = sphi 0, %s22
      %s26 = sphi 0, %s25
      %s42 = sphi 0, %s26
      %s48 = sphi 0, %s50
      %s51 = sphi 0, %s48
      %s52 = sphi 0, %s51
      %s68 = sphi 0, %s52
      %s74 = sphi 0, %s76
      %s77 = sphi 0, %s74
      %s78 = sphi 0, %s77
      %s94 = sphi 0, %s78
    $region4: #{reducer_forward.1} parent=1 // loop_header_branch
      %15 = sbr.rel (%p13) target = $region8
    $region5: #{reducer_forward.1} parent=1 // loop_body
      %s17 = ssub.s32 %s12, 1
      %s18 = ssub.s32 %s12, 2
      %s19 = sadd.s32 %s12, 1
      %s20 = ssub.s32 %s12, %s19
      %p21 = scmp.eq.s32.totalorder %s20, 0
      %s23 = sadd.s32 %s22, 1
      %s24 = scalar_select %p21, %s22, %s23
      %p27 = pneg %p21
      %p28 = scmp.eq.s32.totalorder %s12, 1
      %p29 = por %p27, %p28
      %p30 = scmp.ne.s32.totalorder %s22, %s25
      %p31 = scmp.eq.s32.totalorder %s12, 0
      %p32 = por %p30, %p31
      %p33 = scmp.ne.s32.totalorder %s22, %s25
      %p34 = scmp.eq.s32.totalorder %s17, 1
      %p35 = por %p33, %p34
      %p36 = scmp.ne.s32.totalorder %s25, %s26
      %p37 = scmp.eq.s32.totalorder %s17, 0
      %p38 = por %p36, %p37
      %p39 = scmp.ne.s32.totalorder %s25, %s26
      %p40 = scmp.eq.s32.totalorder %s18, 1
      %p41 = por %p39, %p40
      %p43 = scmp.ne.s32.totalorder %s26, %s42
      %p44 = scmp.eq.s32.totalorder %s18, 0
      %p45 = por %p43, %p44
      %s46 = ssub.s32 %s12, %s19
      %p47 = scmp.eq.s32.totalorder %s46, 0
      %s49 = sadd.s32 %s48, 1
      %s50 = scalar_select %p47, %s48, %s49
      %p53 = pneg %p47
      %p54 = scmp.eq.s32.totalorder %s12, 1
      %p55 = por %p53, %p54
      %p56 = scmp.ne.s32.totalorder %s48, %s51
      %p57 = scmp.eq.s32.totalorder %s12, 0
      %p58 = por %p56, %p57
      %p59 = scmp.ne.s32.totalorder %s48, %s51
      %p60 = scmp.eq.s32.totalorder %s17, 1
      %p61 = por %p59, %p60
      %p62 = scmp.ne.s32.totalorder %s51, %s52
      %p63 = scmp.eq.s32.totalorder %s17, 0
      %p64 = por %p62, %p63
      %p65 = scmp.ne.s32.totalorder %s51, %s52
      %p66 = scmp.eq.s32.totalorder %s18, 1
      %p67 = por %p65, %p66
      %p69 = scmp.ne.s32.totalorder %s52, %s68
      %p70 = scmp.eq.s32.totalorder %s18, 0
      %p71 = por %p69, %p70
      %s72 = ssub.s32 %s12, %s19
      %p73 = scmp.eq.s32.totalorder %s72, 0
      %s75 = sadd.s32 %s74, 1
      %s76 = scalar_select %p73, %s74, %s75
      %p79 = pneg %p73
      %p80 = scmp.eq.s32.totalorder %s12, 1
      %p81 = por %p79, %p80
      %p82 = scmp.ne.s32.totalorder %s74, %s77
      %p83 = scmp.eq.s32.totalorder %s12, 0
      %p84 = por %p82, %p83
      %p85 = scmp.ne.s32.totalorder %s74, %s77
      %p86 = scmp.eq.s32.totalorder %s17, 1
      %p87 = por %p85, %p86
      %p88 = scmp.ne.s32.totalorder %s77, %s78
      %p89 = scmp.eq.s32.totalorder %s17, 0
      %p90 = por %p88, %p89
      %p91 = scmp.ne.s32.totalorder %s77, %s78
      %p92 = scmp.eq.s32.totalorder %s18, 1
      %p93 = por %p91, %p92
      %p95 = scmp.ne.s32.totalorder %s78, %s94
      %p96 = scmp.eq.s32.totalorder %s18, 0
      %p97 = por %p95, %p96
      %p98 = scmp.le.s32.totalorder 1, %s12
      %p99 = scmp.lt.s32.totalorder %s12, 3
      %p100 = pnand %p98, %p99
      %p101 = pneg %p100
      // Predicated region
      $region9: #{reducer_forward.1} parent=5 // pred_check
        _
      $region10: #{reducer_forward.1} parent=5 // pred_check_branch
        %103 = sbr.rel (%p100) target = $region12
      $region11: #{reducer_forward.1} parent=5 // pred_region
        %s104 = ssub.s32 %s12, 1
      $region12: #{reducer_forward.1} parent=5 // pred_fallthru
        _
      %p105 = scmp.lt.s32.totalorder %s12, 2
      // Predicated region
      $region13: #{reducer_forward.1} parent=5 // pred_check
        %p106 = pneg %p105
      $region14: #{reducer_forward.1} parent=5 // pred_check_branch
        %108 = sbr.rel (%p106) target = $region16
      $region15: #{reducer_forward.1} parent=5 // pred_region
        // Predicated region
        $region17: #{reducer_forward.1} parent=15 // pred_check
          %p109 = pneg %p32
        $region18: #{reducer_forward.1} parent=15 // pred_check_branch
          %111 = sbr.rel (%p109) target = $region20
        $region19: #{reducer_forward.1} parent=15 // pred_region
          %s112 = sand.u32 %s22, 1
          %s113 = scalar_lea.sflag [#allocation3], %s112
          %s114 = sand.u32 %s22, 1
          %s115 = smul.addr %s114, 64
          %s116 = scalar_lea.vmem [#allocation2], %s115
          %s117 = smul.u32 8, %s12
          %119 = vsyncadd %s113, 0
          %s120 = smul.addr %s117, 8
          %s121 = scalar_lea.hbm %s0, %s120
          %s122 = sshll.u32 %s121, 4
          %s123 = int_to_ptr.hbm [resolvable:$true] %s122
          %s124 = sshll.u32 %s116, 4
          %s125 = int_to_ptr.vmem [resolvable:$true] %s124
          %130 = dma.hbm_to_vmem [thread:$0]  %s123, 1024, %s125, %s113, 128, 128, 8
        $region20: #{reducer_forward.1} parent=15 // pred_fallthru
          _
      $region16: #{reducer_forward.1} parent=5 // pred_fallthru
        _
      %p131 = scmp.le.s32.totalorder 1, %s12
      %p132 = scmp.lt.s32.totalorder %s12, 3
      %p133 = pnand %p131, %p132
      %p134 = pneg %p133
      // Predicated region
      $region21: #{reducer_forward.1} parent=5 // pred_check
        _
      $region22: #{reducer_forward.1} parent=5 // pred_check_branch
        %136 = sbr.rel (%p133) target = $region24
      $region23: #{reducer_forward.1} parent=5 // pred_region
        %s137 = ssub.s32 %s12, 1
        %s138 = sand.u32 %s25, 1
        %s139 = scalar_lea.sflag [#allocation3], %s138
        %s140 = sand.u32 %s25, 1
        %s141 = smul.addr %s140, 64
        %s142 = scalar_lea.vmem [#allocation2], %s141
        // Predicated region
        $region25: #{reducer_forward.1} parent=23 // pred_check
          %p143 = pneg %p38
        $region26: #{reducer_forward.1} parent=23 // pred_check_branch
          %145 = sbr.rel (%p143) target = $region28
        $region27: #{reducer_forward.1} parent=23 // pred_region
          %147 = dma.done %s139, 1024
        $region28: #{reducer_forward.1} parent=23 // pred_fallthru
          _
        %s148 = sand.u32 %s25, 1
        %s149 = scalar_lea.sflag [#allocation3], %s148
        %s150 = sand.u32 %s25, 1
        %s151 = smul.addr %s150, 64
        %s152 = scalar_lea.vmem [#allocation2], %s151
        %p153 = pneg %p38
        %p154 = pneg %p35
        %p155 = pneg %p64
        %p156 = pneg %p61
        %p157 = scmp.lt.s32.totalorder %s17, 1
        %s158 = scalar_select %p157, %s17, 1
        %s159 = smul.addr %s158, 8
        %s160 = scalar_lea.vmem %s1, %s159
        %p161 = pneg %p90
        %p162 = pneg %p87
        %p163 = scmp.lt.s32.totalorder %s17, 1
        %s164 = scalar_select %p163, %s17, 1
        %s165 = smul.addr %s164, 8
        %s166 = scalar_lea.vmem %s2, %s165
        %s167 = smul.u32 8, %s17
        %p168 = scmp.lt.s32.totalorder %s17, 1
        %s169 = scalar_select %p168, %s17, 1
        %s170 = smul.addr %s169, 8
        %s171 = scalar_lea.vmem %s1, %s170
        %p172 = scmp.lt.s32.totalorder %s17, 1
        %s173 = scalar_select %p172, %s17, 1
        %s174 = smul.addr %s173, 8
        %s175 = scalar_lea.vmem %s2, %s174
        %v176 = vld [vmem:[%s142] sm:$0xff]
        %v177 = vld [vmem:[%s142 + $0x8] sm:$0xff]
        %v178 = vld [vmem:[%s142 + $0x10] sm:$0xff]
        %v179 = vld [vmem:[%s142 + $0x18] sm:$0xff]
        %v180 = vld [vmem:[%s142 + $0x20] sm:$0xff]
        %v181 = vld [vmem:[%s142 + $0x28] sm:$0xff]
        %v182 = vld [vmem:[%s142 + $0x30] sm:$0xff]
        %v183 = vld [vmem:[%s142 + $0x38] sm:$0xff]
        %v184 = vlaneseq
        %v185 = vshrl.u32 %v184, 7
        %vm186 = vcmp.ne.s32.totalorder %v185, 0
        %vm187 = vcmp.ne.s32.totalorder %v185, 1
        %vm188 = vcmp.ne.s32.totalorder %v185, 2
        %vm189 = vcmp.ne.s32.totalorder %v185, 3
        %vm190 = vcmp.ne.s32.totalorder %v185, 4
        %vm191 = vcmp.ne.s32.totalorder %v185, 5
        %vm192 = vcmp.ne.s32.totalorder %v185, 6
        %vm193 = vcmp.ne.s32.totalorder %v185, 7
        %v194 = vsel %vm186, 1, 0
        %v195 = vsel %vm187, 1, 0
        %v196 = vsel %vm188, 1, 0
        %v197 = vsel %vm189, 1, 0
        %v198 = vsel %vm190, 1, 0
        %v199 = vsel %vm191, 1, 0
        %v200 = vsel %vm192, 1, 0
        %v201 = vsel %vm193, 1, 0
        %vm202 = vcmp.eq.s32.totalorder %v194, 1
        %vm203 = vcmp.eq.s32.totalorder %v195, 1
        %vm204 = vcmp.eq.s32.totalorder %v196, 1
        %vm205 = vcmp.eq.s32.totalorder %v197, 1
        %vm206 = vcmp.eq.s32.totalorder %v198, 1
        %vm207 = vcmp.eq.s32.totalorder %v199, 1
        %vm208 = vcmp.eq.s32.totalorder %v200, 1
        %vm209 = vcmp.eq.s32.totalorder %v201, 1
        %v210 = vsel %vm202, %v176, 0.0
        %v211 = vsel %vm203, %v177, 0.0
        %v212 = vsel %vm204, %v178, 0.0
        %v213 = vsel %vm205, %v179, 0.0
        %v214 = vsel %vm206, %v180, 0.0
        %v215 = vsel %vm207, %v181, 0.0
        %v216 = vsel %vm208, %v182, 0.0
        %v217 = vsel %vm209, %v183, 0.0
        %vm218 = vcmask 130048
        %v219 = vsel %vm218, %v210, -inf
        %v220 = vrot.slane %v219, 4
        %v221 = vmax.f32 %v219, %v220
        %v222 = vrot.slane %v221, 2
        %v223 = vmax.f32 %v221, %v222
        %v224 = vrot.slane %v223, 1
        %v225 = vmax.f32 %v223, %v224
        %v226 = vsel %vm218, %v211, -inf
        %v227 = vrot.slane %v226, 4
        %v228 = vmax.f32 %v226, %v227
        %v229 = vrot.slane %v228, 2
        %v230 = vmax.f32 %v228, %v229
        %v231 = vrot.slane %v230, 1
        %v232 = vmax.f32 %v230, %v231
        %v233 = vsel %vm218, %v212, -inf
        %v234 = vrot.slane %v233, 4
        %v235 = vmax.f32 %v233, %v234
        %v236 = vrot.slane %v235, 2
        %v237 = vmax.f32 %v235, %v236
        %v238 = vrot.slane %v237, 1
        %v239 = vmax.f32 %v237, %v238
        %v240 = vsel %vm218, %v213, -inf
        %v241 = vrot.slane %v240, 4
        %v242 = vmax.f32 %v240, %v241
        %v243 = vrot.slane %v242, 2
        %v244 = vmax.f32 %v242, %v243
        %v245 = vrot.slane %v244, 1
        %v246 = vmax.f32 %v244, %v245
        %v247 = vsel %vm218, %v214, -inf
        %v248 = vrot.slane %v247, 4
        %v249 = vmax.f32 %v247, %v248
        %v250 = vrot.slane %v249, 2
        %v251 = vmax.f32 %v249, %v250
        %v252 = vrot.slane %v251, 1
        %v253 = vmax.f32 %v251, %v252
        %v254 = vsel %vm218, %v215, -inf
        %v255 = vrot.slane %v254, 4
        %v256 = vmax.f32 %v254, %v255
        %v257 = vrot.slane %v256, 2
        %v258 = vmax.f32 %v256, %v257
        %v259 = vrot.slane %v258, 1
        %v260 = vmax.f32 %v258, %v259
        %v261 = vsel %vm218, %v216, -inf
        %v262 = vrot.slane %v261, 4
        %v263 = vmax.f32 %v261, %v262
        %v264 = vrot.slane %v263, 2
        %v265 = vmax.f32 %v263, %v264
        %v266 = vrot.slane %v265, 1
        %v267 = vmax.f32 %v265, %v266
        %v268 = vsel %vm218, %v217, -inf
        %v269 = vrot.slane %v268, 4
        %v270 = vmax.f32 %v268, %v269
        %v271 = vrot.slane %v270, 2
        %v272 = vmax.f32 %v270, %v271
        %v273 = vrot.slane %v272, 1
        %v274 = vmax.f32 %v272, %v273
        %vm283 = vcmask 1041409
        %v284 = vsel %vm283, %v232, %v225
        %vm285 = vcmask 1042434
        %v286 = vsel %vm285, %v239, %v284
        %vm287 = vcmask 1043459
        %v288 = vsel %vm287, %v246, %v286
        %vm289 = vcmask 1044484
        %v290 = vsel %vm289, %v253, %v288
        %vm291 = vcmask 1045509
        %v292 = vsel %vm291, %v260, %v290
        %vm293 = vcmask 1046534
        %v294 = vsel %vm293, %v267, %v292
        %vm295 = vcmask 1047559
        %v296 = vsel %vm295, %v274, %v294
        %298 = vst.msk [vmem:[%s171] sm:$0xff] %vm218, %v296
        %v299 = vsel %vm218, %v210, inf
        %v300 = vrot.slane %v299, 4
        %v301 = vmin.f32 %v299, %v300
        %v302 = vrot.slane %v301, 2
        %v303 = vmin.f32 %v301, %v302
        %v304 = vrot.slane %v303, 1
        %v305 = vmin.f32 %v303, %v304
        %v306 = vsel %vm218, %v211, inf
        %v307 = vrot.slane %v306, 4
        %v308 = vmin.f32 %v306, %v307
        %v309 = vrot.slane %v308, 2
        %v310 = vmin.f32 %v308, %v309
        %v311 = vrot.slane %v310, 1
        %v312 = vmin.f32 %v310, %v311
        %v313 = vsel %vm218, %v212, inf
        %v314 = vrot.slane %v313, 4
        %v315 = vmin.f32 %v313, %v314
        %v316 = vrot.slane %v315, 2
        %v317 = vmin.f32 %v315, %v316
        %v318 = vrot.slane %v317, 1
        %v319 = vmin.f32 %v317, %v318
        %v320 = vsel %vm218, %v213, inf
        %v321 = vrot.slane %v320, 4
        %v322 = vmin.f32 %v320, %v321
        %v323 = vrot.slane %v322, 2
        %v324 = vmin.f32 %v322, %v323
        %v325 = vrot.slane %v324, 1
        %v326 = vmin.f32 %v324, %v325
        %v327 = vsel %vm218, %v214, inf
        %v328 = vrot.slane %v327, 4
        %v329 = vmin.f32 %v327, %v328
        %v330 = vrot.slane %v329, 2
        %v331 = vmin.f32 %v329, %v330
        %v332 = vrot.slane %v331, 1
        %v333 = vmin.f32 %v331, %v332
        %v334 = vsel %vm218, %v215, inf
        %v335 = vrot.slane %v334, 4
        %v336 = vmin.f32 %v334, %v335
        %v337 = vrot.slane %v336, 2
        %v338 = vmin.f32 %v336, %v337
        %v339 = vrot.slane %v338, 1
        %v340 = vmin.f32 %v338, %v339
        %v341 = vsel %vm218, %v216, inf
        %v342 = vrot.slane %v341, 4
        %v343 = vmin.f32 %v341, %v342
        %v344 = vrot.slane %v343, 2
        %v345 = vmin.f32 %v343, %v344
        %v346 = vrot.slane %v345, 1
        %v347 = vmin.f32 %v345, %v346
        %v348 = vsel %vm218, %v217, inf
        %v349 = vrot.slane %v348, 4
        %v350 = vmin.f32 %v348, %v349
        %v351 = vrot.slane %v350, 2
        %v352 = vmin.f32 %v350, %v351
        %v353 = vrot.slane %v352, 1
        %v354 = vmin.f32 %v352, %v353
        %v363 = vsel %vm283, %v312, %v305
        %v364 = vsel %vm285, %v319, %v363
        %v365 = vsel %vm287, %v326, %v364
        %v366 = vsel %vm289, %v333, %v365
        %v367 = vsel %vm291, %v340, %v366
        %v368 = vsel %vm293, %v347, %v367
        %v369 = vsel %vm295, %v354, %v368
        %371 = vst.msk [vmem:[%s175] sm:$0xff] %vm218, %v369
        %p372 = scmp.lt.s32.totalorder %s17, 1
        %s373 = scalar_select %p372, %s17, 1
        %s374 = smul.addr %s373, 8
        %s375 = scalar_lea.vmem %s1, %s374
        %p376 = scmp.lt.s32.totalorder %s17, 1
        %s377 = scalar_select %p376, %s17, 1
        %s378 = smul.addr %s377, 8
        %s379 = scalar_lea.vmem %s2, %s378
        // Predicated region
        $region29: #{reducer_forward.1} parent=23 // pred_check
          %p380 = pneg %p61
        $region30: #{reducer_forward.1} parent=23 // pred_check_branch
          %382 = sbr.rel (%p380) target = $region32
        $region31: #{reducer_forward.1} parent=23 // pred_region
          _
        $region32: #{reducer_forward.1} parent=23 // pred_fallthru
          _
        // Predicated region
        $region33: #{reducer_forward.1} parent=23 // pred_check
          %p383 = pneg %p87
        $region34: #{reducer_forward.1} parent=23 // pred_check_branch
          %385 = sbr.rel (%p383) target = $region36
        $region35: #{reducer_forward.1} parent=23 // pred_region
          _
        $region36: #{reducer_forward.1} parent=23 // pred_fallthru
          _
      $region24: #{reducer_forward.1} parent=5 // pred_fallthru
        _
      %p386 = scmp.le.s32.totalorder 2, %s12
      // Predicated region
      $region37: #{reducer_forward.1} parent=5 // pred_check
        %p387 = pneg %p386
      $region38: #{reducer_forward.1} parent=5 // pred_check_branch
        %389 = sbr.rel (%p387) target = $region40
      $region39: #{reducer_forward.1} parent=5 // pred_region
        %s390 = ssub.s32 %s12, 2
        // Predicated region
        $region41: #{reducer_forward.1} parent=39 // pred_check
          %p391 = pneg %p67
        $region42: #{reducer_forward.1} parent=39 // pred_check_branch
          %393 = sbr.rel (%p391) target = $region44
        $region43: #{reducer_forward.1} parent=39 // pred_region
          %p394 = scmp.lt.s32.totalorder %s18, 1
          %s395 = scalar_select %p394, %s18, 1
          %s396 = smul.addr %s395, 8
          %s397 = scalar_lea.vmem %s1, %s396
        $region44: #{reducer_forward.1} parent=39 // pred_fallthru
          _
        // Predicated region
        $region45: #{reducer_forward.1} parent=39 // pred_check
          %p398 = pneg %p93
        $region46: #{reducer_forward.1} parent=39 // pred_check_branch
          %400 = sbr.rel (%p398) target = $region48
        $region47: #{reducer_forward.1} parent=39 // pred_region
          %p401 = scmp.lt.s32.totalorder %s18, 1
          %s402 = scalar_select %p401, %s18, 1
          %s403 = smul.addr %s402, 8
          %s404 = scalar_lea.vmem %s2, %s403
        $region48: #{reducer_forward.1} parent=39 // pred_fallthru
          _
      $region40: #{reducer_forward.1} parent=5 // pred_fallthru
        _
    $region6: #{reducer_forward.1} parent=1 // loop_footer
      %s16 = sadd.s32 1, %s12
    $region7: #{reducer_forward.1} parent=1 // loop_footer_branch
      %11 = sbr.rel target = $region3
    $region8: #{reducer_forward.1} parent=1 // loop_exit
      _
    %405 = vsyncpa [#allocation3], 1
    %s406 = scalar_lea.sflag [#allocation3], 1
    %407 = vsyncpa %s406, 1

</llo_original>
